<compile_context>
chip_gen: v7x
topology: tpu7x:2x2x1
jax: 0.10.0
libtpu: 0.0.40
codegen_flags: <defaults>
</compile_context>

<pallas_src>
import functools

import jax
import jax.numpy as jnp
from jax import lax
from jax.experimental import pallas as pl
from jax.experimental.pallas import tpu as pltpu


def _round_up(x, m):
    return ((x + m - 1) // m) * m


def _conv_tap_kernel(w_ref, b_ref, x_ref, o_ref, *, taps, l_out):
    """Fused-im2col conv tile: KH*KW shifted MXU dots, f32 accumulation.

    w_ref : (T, Cout, Cin)   bf16  per-tap weight slices, T = KH*KW
    b_ref : (Cout, 1)        f32   bias
    x_ref : (1, Cin, L_in)   bf16  one image group, spatial flattened on lanes
    o_ref : (1, Cout, L_out) f32   lane-dense output tile
    """
    acc = jnp.zeros((o_ref.shape[1], l_out), jnp.float32)
    for t, shift in enumerate(taps):                     # static unroll (KH*KW)
        x_t = x_ref[0, :, shift:shift + l_out]           # (Cin, L_out) bf16
        acc = acc + jnp.dot(w_ref[t], x_t,
                            preferred_element_type=jnp.float32)
    o_ref[0] = acc + b_ref[...]                          # f32 bias add + store


@functools.partial(jax.jit, static_argnames=("kernel_size", "lane_tile_target"))
def new_mod1_forward(x_nchw, w1, b1, w2, b2, *, kernel_size,
                     lane_tile_target=2048):
    """newMod1.forward (convLayer=True, stride=1, padding=0, dilation=1).

    x_nchw: (N, Cin, H, W); w*: (Cout, Cin, KH, KW); b*: (Cout,).
    w2/b2 (newMod2's stats conv) are accepted for interface fidelity; that
    branch is multiplied by 0 in forward and contributes nothing.
    """
    del w2, b2  # stats path == 0 in forward (see header note)

    kh = kw = kernel_size
    cout, cin = w1.shape[0], w1.shape[1]
    n, _, h, w = x_nchw.shape
    ho, wo = h - kh + 1, w - kw + 1
    hw = h * w

    # Flat lane shift of tap (i, j) on the per-image flattened (H*W) axis.
    taps = tuple(i * w + j for i in range(kh) for j in range(kw))
    max_shift = taps[-1]

    # Images per grid step: target ~lane_tile_target lanes per step, but keep
    # >=2 grid steps when possible so v7x can split the parallel axis.
    ipg = max(1, lane_tile_target // hw)
    ipg = min(ipg, max(1, n // 2))
    g = -(-n // ipg)                                  # ceil(n / ipg)
    n_pad = g * ipg

    l_out = _round_up(ipg * hw, 128)                  # lane-dense output width
    l_in = l_out + _round_up(max_shift, 128)          # + halo for tap shifts

    # Input: (N, Cin, H, W) -> (G, Cin, L_in) bf16, spatial flattened on lanes.
    xb = x_nchw.astype(jnp.bfloat16)
    xb = jnp.pad(xb, ((0, n_pad - n), (0, 0), (0, 0), (0, 0)))
    xb = xb.reshape(g, ipg, cin, hw)
    xb = jnp.transpose(xb, (0, 2, 1, 3)).reshape(g, cin, ipg * hw)
    xb = jnp.pad(xb, ((0, 0), (0, 0), (0, l_in - ipg * hw)))

    # Weights: (Cout, Cin, KH, KW) -> (KH*KW, Cout, Cin) bf16, tap-major.
    wt = jnp.transpose(w1, (2, 3, 0, 1)).reshape(kh * kw, cout, cin)
    wt = wt.astype(jnp.bfloat16)
    bc = b1.astype(jnp.float32).reshape(cout, 1)

    # VMEM budget: double-buffered in/out blocks + resident weights/bias.
    in_blk = cin * l_in * 2
    out_blk = cout * l_out * 4
    vmem_need = 2 * (in_blk + out_blk) + wt.size * 2 + cout * 4 + (2 << 20)
    vmem_limit = int(min(64 << 20, max(16 << 20, vmem_need)))

    cost = pl.CostEstimate(
        flops=2 * g * cout * kh * kw * cin * l_out,
        transcendentals=0,
        bytes_accessed=int(xb.size * 2 + g * cout * l_out * 4
                           + wt.size * 2 + cout * 4),
    )

    kernel = functools.partial(_conv_tap_kernel, taps=taps, l_out=l_out)
    out = pl.pallas_call(
        kernel,
        out_shape=jax.ShapeDtypeStruct((g, cout, l_out), jnp.float32),
        grid_spec=pltpu.PrefetchScalarGridSpec(
            num_scalar_prefetch=0,
            grid=(g,),
            in_specs=[
                pl.BlockSpec((kh * kw, cout, cin), lambda i: (0, 0, 0)),  # W
                pl.BlockSpec((cout, 1), lambda i: (0, 0)),                # b
                pl.BlockSpec((1, cin, l_in), lambda i: (i, 0, 0)),        # x
            ],
            out_specs=pl.BlockSpec((1, cout, l_out), lambda i: (i, 0, 0)),
        ),
        compiler_params=pltpu.CompilerParams(
            dimension_semantics=("parallel",),
            vmem_limit_bytes=vmem_limit,
        ),
        cost_estimate=cost,
    )(wt, bc, xb)

    # (G, Cout, L_out) -> (N, Cout, Ho, Wo).  For ipg == 1 the transpose is a
    # degenerate (free) reshape; sliced-off lanes are the tap-shift garbage.
    out = out[:, :, : ipg * hw].reshape(g, cout, ipg, h, w)
    out = jnp.transpose(out, (0, 2, 1, 3, 4)).reshape(n_pad, cout, h, w)
    return out[:n, :, :ho, :wo]


if __name__ == "__main__":
    # Small shapes consistent with the module: conv layer, NCHW input.
    N, Cin, H, W = 2, 4, 16, 16
    Cout, K = 8, 3

    key = jax.random.PRNGKey(0)
    k_x, k_w1, k_b1, k_w2, k_b2 = jax.random.split(key, 5)

    x = jax.random.normal(k_x, (N, Cin, H, W), dtype=jnp.float32)
    # Deterministic param init (PyTorch-like uniform fan-in bound).
    bound = 1.0 / (Cin * K * K) ** 0.5
    w1 = jax.random.uniform(k_w1, (Cout, Cin, K, K), minval=-bound, maxval=bound)
    b1 = jax.random.uniform(k_b1, (Cout,), minval=-bound, maxval=bound)
    w2 = jax.random.uniform(k_w2, (Cout, Cin, K, K), minval=-bound, maxval=bound)
    b2 = jax.random.uniform(k_b2, (Cout,), minval=-bound, maxval=bound)

    out = new_mod1_forward(x, w1, b1, w2, b2, kernel_size=K)
    out = jax.block_until_ready(out)

    # Reference with the same bf16-rounded operands (the kernel streams bf16
    # and accumulates in f32).  Stats branch contributes 0 in forward.
    xr = x.astype(jnp.bfloat16).astype(jnp.float32)
    wr = w1.astype(jnp.bfloat16).astype(jnp.float32)
    ref = lax.conv_general_dilated(
        xr, wr, window_strides=(1, 1), padding="VALID",
        dimension_numbers=("NCHW", "OIHW", "NCHW"),
        precision=lax.Precision.HIGHEST) + b1[None, :, None, None]

    assert out.shape == (N, Cout, H - K + 1, W - K + 1), out.shape
    err = float(jnp.max(jnp.abs(out - ref)))
    assert err < 1e-2, f"max abs error {err}"
    print("KERNEL_OK")
</pallas_src>

<mosaic_0001>
module attributes {stable_mosaic.version = 11 : i64} {
  func.func @_conv_tap_kernel(%arg0: i32, %arg1: memref<9x8x4xbf16, #tpu.memory_space<vmem>>, %arg2: memref<8x1xf32, #tpu.memory_space<vmem>>, %arg3: memref<1x4x384xbf16, #tpu.memory_space<vmem>>, %arg4: memref<1x8x256xf32, #tpu.memory_space<vmem>>) attributes {dimension_semantics = [#tpu.dimension_semantics<parallel>], iteration_bounds = array<i64: 2>, scalar_prefetch = 0 : i64, scratch_operands = 0 : i64, tpu.core_type = #tpu.core_type<tc>, window_params = [{pipeline_mode = #tpu.pipeline_mode<synchronous>, transform_indices = @transform_0, window_bounds = array<i64: 9, 8, 4>}, {pipeline_mode = #tpu.pipeline_mode<synchronous>, transform_indices = @transform_1, window_bounds = array<i64: 8, 1>}, {transform_indices = @transform_2, window_bounds = array<i64: 1, 4, 384>}, {transform_indices = @transform_3, window_bounds = array<i64: 1, 8, 256>}]} {
    %cst = arith.constant 0.000000e+00 : f32
    %0 = vector.broadcast %cst : f32 to vector<8x256xf32>
    %c0 = arith.constant 0 : index
    %c0_0 = arith.constant 0 : index
    %c0_1 = arith.constant 0 : index
    %1 = vector.load %arg3[%c0, %c0_0, %c0_1] : memref<1x4x384xbf16, #tpu.memory_space<vmem>>, vector<1x4x256xbf16>
    %2 = vector.shape_cast %1 : vector<1x4x256xbf16> to vector<4x256xbf16>
    %c0_2 = arith.constant 0 : index
    %c0_3 = arith.constant 0 : index
    %c0_4 = arith.constant 0 : index
    %3 = vector.load %arg1[%c0_2, %c0_3, %c0_4] : memref<9x8x4xbf16, #tpu.memory_space<vmem>>, vector<1x8x4xbf16>
    %4 = vector.shape_cast %3 : vector<1x8x4xbf16> to vector<8x4xbf16>
    %cst_5 = arith.constant dense<0.000000e+00> : vector<8x256xf32>
    %5 = tpu.matmul %4, %2, %cst_5 {dimension_numbers = #tpu.dot_dimension_numbers<[1], [0], [0], [1], [0, 0, 1, 1], [], []>} : vector<8x4xbf16>, vector<4x256xbf16>, vector<8x256xf32> -> vector<8x256xf32>
    %6 = arith.addf %0, %5 : vector<8x256xf32>
    %c0_6 = arith.constant 0 : index
    %c0_7 = arith.constant 0 : index
    %c1 = arith.constant 1 : index
    %7 = vector.load %arg3[%c0_6, %c0_7, %c1] : memref<1x4x384xbf16, #tpu.memory_space<vmem>>, vector<1x4x256xbf16>
    %8 = vector.shape_cast %7 : vector<1x4x256xbf16> to vector<4x256xbf16>
    %c1_8 = arith.constant 1 : index
    %c0_9 = arith.constant 0 : index
    %c0_10 = arith.constant 0 : index
    %9 = vector.load %arg1[%c1_8, %c0_9, %c0_10] : memref<9x8x4xbf16, #tpu.memory_space<vmem>>, vector<1x8x4xbf16>
    %10 = vector.shape_cast %9 : vector<1x8x4xbf16> to vector<8x4xbf16>
    %cst_11 = arith.constant dense<0.000000e+00> : vector<8x256xf32>
    %11 = tpu.matmul %10, %8, %cst_11 {dimension_numbers = #tpu.dot_dimension_numbers<[1], [0], [0], [1], [0, 0, 1, 1], [], []>} : vector<8x4xbf16>, vector<4x256xbf16>, vector<8x256xf32> -> vector<8x256xf32>
    %12 = arith.addf %6, %11 : vector<8x256xf32>
    %c0_12 = arith.constant 0 : index
    %c0_13 = arith.constant 0 : index
    %c2 = arith.constant 2 : index
    %13 = vector.load %arg3[%c0_12, %c0_13, %c2] : memref<1x4x384xbf16, #tpu.memory_space<vmem>>, vector<1x4x256xbf16>
    %14 = vector.shape_cast %13 : vector<1x4x256xbf16> to vector<4x256xbf16>
    %c2_14 = arith.constant 2 : index
    %c0_15 = arith.constant 0 : index
    %c0_16 = arith.constant 0 : index
    %15 = vector.load %arg1[%c2_14, %c0_15, %c0_16] : memref<9x8x4xbf16, #tpu.memory_space<vmem>>, vector<1x8x4xbf16>
    %16 = vector.shape_cast %15 : vector<1x8x4xbf16> to vector<8x4xbf16>
    %cst_17 = arith.constant dense<0.000000e+00> : vector<8x256xf32>
    %17 = tpu.matmul %16, %14, %cst_17 {dimension_numbers = #tpu.dot_dimension_numbers<[1], [0], [0], [1], [0, 0, 1, 1], [], []>} : vector<8x4xbf16>, vector<4x256xbf16>, vector<8x256xf32> -> vector<8x256xf32>
    %18 = arith.addf %12, %17 : vector<8x256xf32>
    %c0_18 = arith.constant 0 : index
    %c0_19 = arith.constant 0 : index
    %c16 = arith.constant 16 : index
    %19 = vector.load %arg3[%c0_18, %c0_19, %c16] : memref<1x4x384xbf16, #tpu.memory_space<vmem>>, vector<1x4x256xbf16>
    %20 = vector.shape_cast %19 : vector<1x4x256xbf16> to vector<4x256xbf16>
    %c3 = arith.constant 3 : index
    %c0_20 = arith.constant 0 : index
    %c0_21 = arith.constant 0 : index
    %21 = vector.load %arg1[%c3, %c0_20, %c0_21] : memref<9x8x4xbf16, #tpu.memory_space<vmem>>, vector<1x8x4xbf16>
    %22 = vector.shape_cast %21 : vector<1x8x4xbf16> to vector<8x4xbf16>
    %cst_22 = arith.constant dense<0.000000e+00> : vector<8x256xf32>
    %23 = tpu.matmul %22, %20, %cst_22 {dimension_numbers = #tpu.dot_dimension_numbers<[1], [0], [0], [1], [0, 0, 1, 1], [], []>} : vector<8x4xbf16>, vector<4x256xbf16>, vector<8x256xf32> -> vector<8x256xf32>
    %24 = arith.addf %18, %23 : vector<8x256xf32>
    %c0_23 = arith.constant 0 : index
    %c0_24 = arith.constant 0 : index
    %c17 = arith.constant 17 : index
    %25 = vector.load %arg3[%c0_23, %c0_24, %c17] : memref<1x4x384xbf16, #tpu.memory_space<vmem>>, vector<1x4x256xbf16>
    %26 = vector.shape_cast %25 : vector<1x4x256xbf16> to vector<4x256xbf16>
    %c4 = arith.constant 4 : index
    %c0_25 = arith.constant 0 : index
    %c0_26 = arith.constant 0 : index
    %27 = vector.load %arg1[%c4, %c0_25, %c0_26] : memref<9x8x4xbf16, #tpu.memory_space<vmem>>, vector<1x8x4xbf16>
    %28 = vector.shape_cast %27 : vector<1x8x4xbf16> to vector<8x4xbf16>
    %cst_27 = arith.constant dense<0.000000e+00> : vector<8x256xf32>
    %29 = tpu.matmul %28, %26, %cst_27 {dimension_numbers = #tpu.dot_dimension_numbers<[1], [0], [0], [1], [0, 0, 1, 1], [], []>} : vector<8x4xbf16>, vector<4x256xbf16>, vector<8x256xf32> -> vector<8x256xf32>
    %30 = arith.addf %24, %29 : vector<8x256xf32>
    %c0_28 = arith.constant 0 : index
    %c0_29 = arith.constant 0 : index
    %c18 = arith.constant 18 : index
    %31 = vector.load %arg3[%c0_28, %c0_29, %c18] : memref<1x4x384xbf16, #tpu.memory_space<vmem>>, vector<1x4x256xbf16>
    %32 = vector.shape_cast %31 : vector<1x4x256xbf16> to vector<4x256xbf16>
    %c5 = arith.constant 5 : index
    %c0_30 = arith.constant 0 : index
    %c0_31 = arith.constant 0 : index
    %33 = vector.load %arg1[%c5, %c0_30, %c0_31] : memref<9x8x4xbf16, #tpu.memory_space<vmem>>, vector<1x8x4xbf16>
    %34 = vector.shape_cast %33 : vector<1x8x4xbf16> to vector<8x4xbf16>
    %cst_32 = arith.constant dense<0.000000e+00> : vector<8x256xf32>
    %35 = tpu.matmul %34, %32, %cst_32 {dimension_numbers = #tpu.dot_dimension_numbers<[1], [0], [0], [1], [0, 0, 1, 1], [], []>} : vector<8x4xbf16>, vector<4x256xbf16>, vector<8x256xf32> -> vector<8x256xf32>
    %36 = arith.addf %30, %35 : vector<8x256xf32>
    %c0_33 = arith.constant 0 : index
    %c0_34 = arith.constant 0 : index
    %c32 = arith.constant 32 : index
    %37 = vector.load %arg3[%c0_33, %c0_34, %c32] : memref<1x4x384xbf16, #tpu.memory_space<vmem>>, vector<1x4x256xbf16>
    %38 = vector.shape_cast %37 : vector<1x4x256xbf16> to vector<4x256xbf16>
    %c6 = arith.constant 6 : index
    %c0_35 = arith.constant 0 : index
    %c0_36 = arith.constant 0 : index
    %39 = vector.load %arg1[%c6, %c0_35, %c0_36] : memref<9x8x4xbf16, #tpu.memory_space<vmem>>, vector<1x8x4xbf16>
    %40 = vector.shape_cast %39 : vector<1x8x4xbf16> to vector<8x4xbf16>
    %cst_37 = arith.constant dense<0.000000e+00> : vector<8x256xf32>
    %41 = tpu.matmul %40, %38, %cst_37 {dimension_numbers = #tpu.dot_dimension_numbers<[1], [0], [0], [1], [0, 0, 1, 1], [], []>} : vector<8x4xbf16>, vector<4x256xbf16>, vector<8x256xf32> -> vector<8x256xf32>
    %42 = arith.addf %36, %41 : vector<8x256xf32>
    %c0_38 = arith.constant 0 : index
    %c0_39 = arith.constant 0 : index
    %c33 = arith.constant 33 : index
    %43 = vector.load %arg3[%c0_38, %c0_39, %c33] : memref<1x4x384xbf16, #tpu.memory_space<vmem>>, vector<1x4x256xbf16>
    %44 = vector.shape_cast %43 : vector<1x4x256xbf16> to vector<4x256xbf16>
    %c7 = arith.constant 7 : index
    %c0_40 = arith.constant 0 : index
    %c0_41 = arith.constant 0 : index
    %45 = vector.load %arg1[%c7, %c0_40, %c0_41] : memref<9x8x4xbf16, #tpu.memory_space<vmem>>, vector<1x8x4xbf16>
    %46 = vector.shape_cast %45 : vector<1x8x4xbf16> to vector<8x4xbf16>
    %cst_42 = arith.constant dense<0.000000e+00> : vector<8x256xf32>
    %47 = tpu.matmul %46, %44, %cst_42 {dimension_numbers = #tpu.dot_dimension_numbers<[1], [0], [0], [1], [0, 0, 1, 1], [], []>} : vector<8x4xbf16>, vector<4x256xbf16>, vector<8x256xf32> -> vector<8x256xf32>
    %48 = arith.addf %42, %47 : vector<8x256xf32>
    %c0_43 = arith.constant 0 : index
    %c0_44 = arith.constant 0 : index
    %c34 = arith.constant 34 : index
    %49 = vector.load %arg3[%c0_43, %c0_44, %c34] : memref<1x4x384xbf16, #tpu.memory_space<vmem>>, vector<1x4x256xbf16>
    %50 = vector.shape_cast %49 : vector<1x4x256xbf16> to vector<4x256xbf16>
    %c8 = arith.constant 8 : index
    %c0_45 = arith.constant 0 : index
    %c0_46 = arith.constant 0 : index
    %51 = vector.load %arg1[%c8, %c0_45, %c0_46] : memref<9x8x4xbf16, #tpu.memory_space<vmem>>, vector<1x8x4xbf16>
    %52 = vector.shape_cast %51 : vector<1x8x4xbf16> to vector<8x4xbf16>
    %cst_47 = arith.constant dense<0.000000e+00> : vector<8x256xf32>
    %53 = tpu.matmul %52, %50, %cst_47 {dimension_numbers = #tpu.dot_dimension_numbers<[1], [0], [0], [1], [0, 0, 1, 1], [], []>} : vector<8x4xbf16>, vector<4x256xbf16>, vector<8x256xf32> -> vector<8x256xf32>
    %54 = arith.addf %48, %53 : vector<8x256xf32>
    %c0_48 = arith.constant 0 : index
    %c0_49 = arith.constant 0 : index
    %55 = vector.load %arg2[%c0_48, %c0_49] : memref<8x1xf32, #tpu.memory_space<vmem>>, vector<8x1xf32>
    %56 = vector.broadcast %55 : vector<8x1xf32> to vector<8x256xf32>
    %57 = arith.addf %54, %56 : vector<8x256xf32>
    %c0_50 = arith.constant 0 : index
    %c0_51 = arith.constant 0 : index
    %c0_52 = arith.constant 0 : index
    %58 = vector.load %arg4[%c0_50, %c0_51, %c0_52] : memref<1x8x256xf32, #tpu.memory_space<vmem>>, vector<1x8x256xf32>
    %59 = vector.shape_cast %58 : vector<1x8x256xf32> to vector<8x256xf32>
    %60 = vector.shape_cast %57 : vector<8x256xf32> to vector<1x8x256xf32>
    tpu.vector_store %arg4[%c0_50, %c0_51, %c0_52], %60 {strides = array<i32>} : memref<1x8x256xf32, #tpu.memory_space<vmem>>, vector<1x8x256xf32>,
    return
  }
  func.func @transform_0(%arg0: i32) -> (i32, i32, i32) {
    %c0_i32 = arith.constant 0 : i32
    %c0_i32_0 = arith.constant 0 : i32
    %c0_i32_1 = arith.constant 0 : i32
    %c0_i32_2 = arith.constant 0 : i32
    return %c0_i32, %c0_i32_0, %c0_i32_1 : i32, i32, i32
  }
  func.func @transform_1(%arg0: i32) -> (i32, i32) {
    %c0_i32 = arith.constant 0 : i32
    %c0_i32_0 = arith.constant 0 : i32
    %c0_i32_1 = arith.constant 0 : i32
    return %c0_i32, %c0_i32_0 : i32, i32
  }
  func.func @transform_2(%arg0: i32) -> (i32, i32, i32) {
    %c0_i32 = arith.constant 0 : i32
    %c0_i32_0 = arith.constant 0 : i32
    %c0_i32_1 = arith.constant 0 : i32
    return %arg0, %c0_i32, %c0_i32_0 : i32, i32, i32
  }
  func.func @transform_3(%arg0: i32) -> (i32, i32, i32) {
    %c0_i32 = arith.constant 0 : i32
    %c0_i32_0 = arith.constant 0 : i32
    %c0_i32_1 = arith.constant 0 : i32
    return %arg0, %c0_i32, %c0_i32_0 : i32, i32, i32
  }
}

</mosaic_0001>

<llo_original>
// kernel: new_mod1_forward.1
$region0: #{new_mod1_forward.1}
  #allocation0 [shape = 'u32[]', space=smem, size = 0x4, offset = 0x4, fixed_abs, tag = 'smem constant byte address 0x4 - core index']
  #allocation1 [shape = 'u32[144,128]{1,0:T(1,128)}', space=vmem, size = 0x12000, scoped, tag = 'internal scratch']
  %s0 = inlined_call_operand.vmem [shape: bf16[9,8,4], index: 0, kind: input, shape index: {}]
  %s1 = inlined_call_operand.vmem [shape: f32[8,1], index: 1, kind: input, shape index: {}]
  %s2 = inlined_call_operand.vmem [shape: bf16[2,4,384], index: 2, kind: input, shape index: {}]
  %s3 = inlined_call_operand.vmem [shape: f32[2,8,256], index: 3, kind: output, shape index: {}]
  %s4 = sld [smem:[#allocation0]]
  $region45: #{new_mod1_forward.1} parent=0
    _
  %s6 = ssub.s32 1, %s4
  %s7 = scalar_select 0, %s6, %s4
  loop: start=0, step=1, limit=4
  $region2: #{new_mod1_forward.1} parent=0 // loop_pre_header
    _
  $region3: #{new_mod1_forward.1} parent=0 // loop_header
    %s9 = sphi 0, %s13
    %p10 = scmp.ge.s32.totalorder %s9, 4
    %s17 = sphi 0, %s17
    %s19 = sphi 0, %s17
    %s20 = sphi 0, %s19
    %s34 = sphi 0, %s20
    %s38 = sphi 0, %s38
    %s40 = sphi 0, %s38
    %s41 = sphi 0, %s40
    %s55 = sphi 0, %s41
    %s61 = sphi 0, %s63
    %s64 = sphi 0, %s61
    %s65 = sphi 0, %s64
    %s81 = sphi 0, %s65
    %s87 = sphi 0, %s89
    %s90 = sphi 0, %s87
    %s91 = sphi 0, %s90
    %s107 = sphi 0, %s91
  $region4: #{new_mod1_forward.1} parent=0 // loop_header_branch
    %12 = sbr.rel (%p10) target = $region8
  $region5: #{new_mod1_forward.1} parent=0 // loop_body
    %s14 = ssub.s32 %s9, 1
    %s15 = ssub.s32 %s9, 2
    %s16 = sadd.s32 %s9, 1
    %s18 = sadd.s32 %s17, 1
    %p21 = scmp.eq.s32.totalorder %s9, 1
    %p22 = scmp.ne.s32.totalorder %s17, %s19
    %p23 = scmp.eq.s32.totalorder %s9, 0
    %p24 = por %p22, %p23
    %p25 = scmp.ne.s32.totalorder %s17, %s19
    %p26 = scmp.eq.s32.totalorder %s14, 1
    %p27 = por %p25, %p26
    %p28 = scmp.ne.s32.totalorder %s19, %s20
    %p29 = scmp.eq.s32.totalorder %s14, 0
    %p30 = por %p28, %p29
    %p31 = scmp.ne.s32.totalorder %s19, %s20
    %p32 = scmp.eq.s32.totalorder %s15, 1
    %p33 = por %p31, %p32
    %p35 = scmp.ne.s32.totalorder %s20, %s34
    %p36 = scmp.eq.s32.totalorder %s15, 0
    %p37 = por %p35, %p36
    %s39 = sadd.s32 %s38, 1
    %p42 = scmp.eq.s32.totalorder %s9, 1
    %p43 = scmp.ne.s32.totalorder %s38, %s40
    %p44 = scmp.eq.s32.totalorder %s9, 0
    %p45 = por %p43, %p44
    %p46 = scmp.ne.s32.totalorder %s38, %s40
    %p47 = scmp.eq.s32.totalorder %s14, 1
    %p48 = por %p46, %p47
    %p49 = scmp.ne.s32.totalorder %s40, %s41
    %p50 = scmp.eq.s32.totalorder %s14, 0
    %p51 = por %p49, %p50
    %p52 = scmp.ne.s32.totalorder %s40, %s41
    %p53 = scmp.eq.s32.totalorder %s15, 1
    %p54 = por %p52, %p53
    %p56 = scmp.ne.s32.totalorder %s41, %s55
    %p57 = scmp.eq.s32.totalorder %s15, 0
    %p58 = por %p56, %p57
    %s59 = ssub.s32 %s9, %s16
    %p60 = scmp.eq.s32.totalorder %s59, 0
    %s62 = sadd.s32 %s61, 1
    %s63 = scalar_select %p60, %s61, %s62
    %p66 = pneg %p60
    %p67 = scmp.eq.s32.totalorder %s9, 1
    %p68 = por %p66, %p67
    %p69 = scmp.ne.s32.totalorder %s61, %s64
    %p70 = scmp.eq.s32.totalorder %s9, 0
    %p71 = por %p69, %p70
    %p72 = scmp.ne.s32.totalorder %s61, %s64
    %p73 = scmp.eq.s32.totalorder %s14, 1
    %p74 = por %p72, %p73
    %p75 = scmp.ne.s32.totalorder %s64, %s65
    %p76 = scmp.eq.s32.totalorder %s14, 0
    %p77 = por %p75, %p76
    %p78 = scmp.ne.s32.totalorder %s64, %s65
    %p79 = scmp.eq.s32.totalorder %s15, 1
    %p80 = por %p78, %p79
    %p82 = scmp.ne.s32.totalorder %s65, %s81
    %p83 = scmp.eq.s32.totalorder %s15, 0
    %p84 = por %p82, %p83
    %s85 = ssub.s32 %s9, %s16
    %p86 = scmp.eq.s32.totalorder %s85, 0
    %s88 = sadd.s32 %s87, 1
    %s89 = scalar_select %p86, %s87, %s88
    %p92 = pneg %p86
    %p93 = scmp.eq.s32.totalorder %s9, 1
    %p94 = por %p92, %p93
    %p95 = scmp.ne.s32.totalorder %s87, %s90
    %p96 = scmp.eq.s32.totalorder %s9, 0
    %p97 = por %p95, %p96
    %p98 = scmp.ne.s32.totalorder %s87, %s90
    %p99 = scmp.eq.s32.totalorder %s14, 1
    %p100 = por %p98, %p99
    %p101 = scmp.ne.s32.totalorder %s90, %s91
    %p102 = scmp.eq.s32.totalorder %s14, 0
    %p103 = por %p101, %p102
    %p104 = scmp.ne.s32.totalorder %s90, %s91
    %p105 = scmp.eq.s32.totalorder %s15, 1
    %p106 = por %p104, %p105
    %p108 = scmp.ne.s32.totalorder %s91, %s107
    %p109 = scmp.eq.s32.totalorder %s15, 0
    %p110 = por %p108, %p109
    %p111 = scmp.le.s32.totalorder 1, %s9
    %p112 = scmp.lt.s32.totalorder %s9, 3
    %p113 = pnand %p111, %p112
    %p114 = pneg %p113
    // Predicated region
    $region9: #{new_mod1_forward.1} parent=5 // pred_check
      _
    $region10: #{new_mod1_forward.1} parent=5 // pred_check_branch
      %116 = sbr.rel (%p113) target = $region12
    $region11: #{new_mod1_forward.1} parent=5 // pred_region
      %s117 = ssub.s32 %s9, 1
      // Predicated region
      $region13: #{new_mod1_forward.1} parent=11 // pred_check
        %p118 = pneg %p30
      $region14: #{new_mod1_forward.1} parent=11 // pred_check_branch
        %120 = sbr.rel (%p118) target = $region16
      $region15: #{new_mod1_forward.1} parent=11 // pred_region
        _
      $region16: #{new_mod1_forward.1} parent=11 // pred_fallthru
        _
      // Predicated region
      $region17: #{new_mod1_forward.1} parent=11 // pred_check
        %p121 = pneg %p51
      $region18: #{new_mod1_forward.1} parent=11 // pred_check_branch
        %123 = sbr.rel (%p121) target = $region20
      $region19: #{new_mod1_forward.1} parent=11 // pred_region
        _
      $region20: #{new_mod1_forward.1} parent=11 // pred_fallthru
        _
    $region12: #{new_mod1_forward.1} parent=5 // pred_fallthru
      _
    %p124 = scmp.lt.s32.totalorder %s9, 2
    // Predicated region
    $region21: #{new_mod1_forward.1} parent=5 // pred_check
      %p125 = pneg %p124
    $region22: #{new_mod1_forward.1} parent=5 // pred_check_branch
      %127 = sbr.rel (%p125) target = $region24
    $region23: #{new_mod1_forward.1} parent=5 // pred_region
      // Predicated region
      $region25: #{new_mod1_forward.1} parent=23 // pred_check
        %p128 = pneg %p71
      $region26: #{new_mod1_forward.1} parent=23 // pred_check_branch
        %130 = sbr.rel (%p128) target = $region28
      $region27: #{new_mod1_forward.1} parent=23 // pred_region
        %p131 = scmp.lt.s32.totalorder %s9, 1
        %s132 = scalar_select %p131, %s9, 1
        %s133 = smul.addr %s132, 3
        %s134 = smul.addr %s133, 2
        %s135 = scalar_lea.vmem %s2, %s134
      $region28: #{new_mod1_forward.1} parent=23 // pred_fallthru
        _
    $region24: #{new_mod1_forward.1} parent=5 // pred_fallthru
      _
    %p136 = scmp.le.s32.totalorder 1, %s9
    %p137 = scmp.lt.s32.totalorder %s9, 3
    %p138 = pnand %p136, %p137
    %p139 = pneg %p138
    // Predicated region
    $region29: #{new_mod1_forward.1} parent=5 // pred_check
      _
    $region30: #{new_mod1_forward.1} parent=5 // pred_check_branch
      %141 = sbr.rel (%p138) target = $region32
    $region31: #{new_mod1_forward.1} parent=5 // pred_region
      %s142 = ssub.s32 %s9, 1
      %p143 = pneg %p30
      %p144 = pneg %p27
      %p145 = pneg %p51
      %p146 = pneg %p48
      %p147 = scmp.lt.s32.totalorder %s14, 1
      %s148 = scalar_select %p147, %s14, 1
      %s149 = smul.addr %s148, 3
      %s150 = smul.addr %s149, 2
      %s151 = scalar_lea.vmem %s2, %s150
      %p152 = pneg %p77
      %p153 = pneg %p74
      %p154 = pneg %p103
      %p155 = pneg %p100
      %p156 = scmp.lt.s32.totalorder %s14, 1
      %s157 = scalar_select %p156, %s14, 1
      %s158 = smul.addr %s157, 2
      %s159 = smul.addr %s158, 8
      %s160 = scalar_lea.vmem %s3, %s159
      %p161 = scmp.lt.s32.totalorder %s14, 1
      %s162 = scalar_select %p161, %s14, 1
      %s163 = smul.addr %s162, 3
      %s164 = smul.addr %s163, 2
      %s165 = scalar_lea.vmem %s2, %s164
      %p166 = scmp.lt.s32.totalorder %s14, 1
      %s167 = scalar_select %p166, %s14, 1
      %s168 = smul.addr %s167, 2
      %s169 = smul.addr %s168, 8
      %s170 = scalar_lea.vmem %s3, %s169
      %v172 = vld [vmem:[%s165] sm:$0xf]
      %v173 = vld [vmem:[%s0] sm:$0xf]
      %v174 = vld [vmem:[%s165] sm:$0x3f]
      %s175 = scalar_lea.vmem %s0, 4
      %v176 = vld [vmem:[%s175] sm:$0xf]
      %v178 = vcombine.high %v174, %v174
      %v180 = vunpack.c.l.s4 1983009808
      %v181 = vunpack.c.0.s8 %v180
      %v182 = vlaneseq
      %v183 = vshrl.u32 %v182, 7
      %v184 = vsub.s32 %v181, %v183
      %v185 = vrot.slane %v174, %v184
      %v187 = vunpack.c.l.s4 1983009808
      %v188 = vunpack.c.0.s8 %v187
      %v189 = vlaneseq
      %v190 = vshrl.u32 %v189, 7
      %v191 = vsub.s32 %v188, %v190
      %v192 = vrot.slane %v178, %v191
      %v193 = vcombine.high %v185, %v185
      %194 = vrot.lane.b32.xlu0 %v185, 127
      %v195 = vpop.permute.xlu0 %194
      %196 = vrot.lane.b32.xlu0 %v193, 127
      %v197 = vpop.permute.xlu0 %196
      %198 = vrot.lane.b32.xlu0 %v192, 127
      %v199 = vpop.permute.xlu0 %198
      %vm200 = vcmask 1039360
      %v201 = vsel %vm200, %v195, %v197
      %v202 = vsel %vm200, %v197, %v199
      %vm203 = vcmask 31744
      %v205 = vsel %vm203, %v176, 0
      %vm207 = vcmask 1041408
      %v209 = vsel %vm207, %v201, 0
      %v212 = vsel %vm207, %v202, 0
      %214 = vmatprep.subr.bf16.mxu0 %v212
      %215 = vmatpush1.bf16.msra.mxu0 %v209
      %216 = vmatprep.subr.bf16.mxu0 0
      %217 = vmatpush1.bf16.msra.mxu0 0
      %218 = vmatprep.subr.bf16.mxu0 0
      %219 = vmatpush1.bf16.msra.mxu0 0
      %220 = vmatprep.subr.bf16.mxu0 0
      %221 = vmatpush1.bf16.msra.mxu0 0
      %222 = vmatprep.subr.bf16.mxu0 0
      %223 = vmatpush1.bf16.msra.mxu0 0
      %224 = vmatprep.subr.bf16.mxu0 0
      %225 = vmatpush1.bf16.msra.mxu0 0
      %226 = vmatprep.subr.bf16.mxu0 0
      %227 = vmatpush1.bf16.msra.mxu0 0
      %228 = vmatprep.subr.bf16.mxu0 0
      %229 = vmatpush1.bf16.msra.mxu0 0
      %230 = vmatprep.subr.bf16.mxu0 0
      %231 = vmatpush1.bf16.msra.mxu0 0
      %232 = vmatprep.subr.bf16.mxu0 0
      %233 = vmatpush1.bf16.msra.mxu0 0
      %234 = vmatprep.subr.bf16.mxu0 0
      %235 = vmatpush1.bf16.msra.mxu0 0
      %236 = vmatprep.subr.bf16.mxu0 0
      %237 = vmatpush1.bf16.msra.mxu0 0
      %238 = vmatprep.subr.bf16.mxu0 0
      %239 = vmatpush1.bf16.msra.mxu0 0
      %240 = vmatprep.subr.bf16.mxu0 0
      %241 = vmatpush1.bf16.msra.mxu0 0
      %242 = vmatprep.subr.bf16.mxu0 0
      %243 = vmatpush1.bf16.msra.mxu0 0
      %244 = vmatprep.subr.bf16.mxu0 0
      %245 = vmatpush1.bf16.msra.mxu0 0
      %246 = vmatprep.mubr.bf16.mxu0 0
      %247 = vmatmul.mubr.bf16.gmra.mrb[0].mxu0 %v205
      %v248 = vpop.f32.mrb[0].mxu0
      %v249 = vadd.f32 0.0, %v248
      %v250 = vpop.f32.mrb[0].mxu0
      %v251 = vadd.f32 0.0, %v250
      %v252 = vpop.f32.mrb[0].mxu0
      %v253 = vpop.f32.mrb[0].mxu0
      %254 = vdwg.mxu0
      %v257 = vunpack.c.l.s4 1983009808
      %v258 = vunpack.c.0.s8 %v257
      %v259 = vlaneseq
      %v260 = vshrl.u32 %v259, 7
      %v261 = vsub.s32 %v258, %v260
      %v262 = vrot.slane %v172, %v261
      %v263 = vcombine.high %v262, %v262
      %v265 = vsel %vm203, %v173, 0
      %v268 = vsel %vm207, %v262, 0
      %v271 = vsel %vm207, %v263, 0
      %273 = vmatprep.subr.bf16.mxu0 %v271
      %274 = vmatpush1.bf16.msra.mxu0 %v268
      %275 = vmatprep.subr.bf16.mxu0 0
      %276 = vmatpush1.bf16.msra.mxu0 0
      %277 = vmatprep.subr.bf16.mxu0 0
      %278 = vmatpush1.bf16.msra.mxu0 0
      %279 = vmatprep.subr.bf16.mxu0 0
      %280 = vmatpush1.bf16.msra.mxu0 0
      %281 = vmatprep.subr.bf16.mxu0 0
      %282 = vmatpush1.bf16.msra.mxu0 0
      %283 = vmatprep.subr.bf16.mxu0 0
      %284 = vmatpush1.bf16.msra.mxu0 0
      %285 = vmatprep.subr.bf16.mxu0 0
      %286 = vmatpush1.bf16.msra.mxu0 0
      %287 = vmatprep.subr.bf16.mxu0 0
      %288 = vmatpush1.bf16.msra.mxu0 0
      %289 = vmatprep.subr.bf16.mxu0 0
      %290 = vmatpush1.bf16.msra.mxu0 0
      %291 = vmatprep.subr.bf16.mxu0 0
      %292 = vmatpush1.bf16.msra.mxu0 0
      %293 = vmatprep.subr.bf16.mxu0 0
      %294 = vmatpush1.bf16.msra.mxu0 0
      %295 = vmatprep.subr.bf16.mxu0 0
      %296 = vmatpush1.bf16.msra.mxu0 0
      %297 = vmatprep.subr.bf16.mxu0 0
      %298 = vmatpush1.bf16.msra.mxu0 0
      %299 = vmatprep.subr.bf16.mxu0 0
      %300 = vmatpush1.bf16.msra.mxu0 0
      %301 = vmatprep.subr.bf16.mxu0 0
      %302 = vmatpush1.bf16.msra.mxu0 0
      %303 = vmatprep.subr.bf16.mxu0 0
      %304 = vmatpush1.bf16.msra.mxu0 0
      %305 = vmatprep.mubr.bf16.mxu0 0
      %306 = vmatmul.mubr.bf16.gmra.mrb[0].mxu0 %v265
      %v307 = vpop.f32.mrb[0].mxu0
      %v308 = vadd.f32 %v249, %v307
      %v309 = vpop.f32.mrb[0].mxu0
      %v310 = vadd.f32 %v251, %v309
      %v311 = vpop.f32.mrb[0].mxu0
      %v312 = vpop.f32.mrb[0].mxu0
      %313 = vdwg.mxu0
      %v314 = vld [vmem:[%s165] sm:$0x3f]
      %s315 = scalar_lea.vmem %s0, 8
      %v316 = vld [vmem:[%s315] sm:$0xf]
      %v318 = vcombine.high %v314, %v314
      %v320 = vunpack.c.l.s4 1983009808
      %v321 = vunpack.c.0.s8 %v320
      %v322 = vlaneseq
      %v323 = vshrl.u32 %v322, 7
      %v324 = vsub.s32 %v321, %v323
      %v325 = vrot.slane %v314, %v324
      %v327 = vunpack.c.l.s4 1983009808
      %v328 = vunpack.c.0.s8 %v327
      %v329 = vlaneseq
      %v330 = vshrl.u32 %v329, 7
      %v331 = vsub.s32 %v328, %v330
      %v332 = vrot.slane %v318, %v331
      %v333 = vcombine.high %v325, %v325
      %334 = vrot.lane.b32.xlu0 %v325, 126
      %v335 = vpop.permute.xlu0 %334
      %336 = vrot.lane.b32.xlu0 %v333, 126
      %v337 = vpop.permute.xlu0 %336
      %338 = vrot.lane.b32.xlu0 %v332, 126
      %v339 = vpop.permute.xlu0 %338
      %vm340 = vcmask 1031168
      %v341 = vsel %vm340, %v335, %v337
      %v342 = vsel %vm340, %v337, %v339
      %v344 = vsel %vm203, %v316, 0
      %v347 = vsel %vm207, %v341, 0
      %v350 = vsel %vm207, %v342, 0
      %352 = vmatprep.subr.bf16.mxu0 %v350
      %353 = vmatpush1.bf16.msra.mxu0 %v347
      %354 = vmatprep.subr.bf16.mxu0 0
      %355 = vmatpush1.bf16.msra.mxu0 0
      %356 = vmatprep.subr.bf16.mxu0 0
      %357 = vmatpush1.bf16.msra.mxu0 0
      %358 = vmatprep.subr.bf16.mxu0 0
      %359 = vmatpush1.bf16.msra.mxu0 0
      %360 = vmatprep.subr.bf16.mxu0 0
      %361 = vmatpush1.bf16.msra.mxu0 0
      %362 = vmatprep.subr.bf16.mxu0 0
      %363 = vmatpush1.bf16.msra.mxu0 0
      %364 = vmatprep.subr.bf16.mxu0 0
      %365 = vmatpush1.bf16.msra.mxu0 0
      %366 = vmatprep.subr.bf16.mxu0 0
      %367 = vmatpush1.bf16.msra.mxu0 0
      %368 = vmatprep.subr.bf16.mxu0 0
      %369 = vmatpush1.bf16.msra.mxu0 0
      %370 = vmatprep.subr.bf16.mxu0 0
      %371 = vmatpush1.bf16.msra.mxu0 0
      %372 = vmatprep.subr.bf16.mxu0 0
      %373 = vmatpush1.bf16.msra.mxu0 0
      %374 = vmatprep.subr.bf16.mxu0 0
      %375 = vmatpush1.bf16.msra.mxu0 0
      %376 = vmatprep.subr.bf16.mxu0 0
      %377 = vmatpush1.bf16.msra.mxu0 0
      %378 = vmatprep.subr.bf16.mxu0 0
      %379 = vmatpush1.bf16.msra.mxu0 0
      %380 = vmatprep.subr.bf16.mxu0 0
      %381 = vmatpush1.bf16.msra.mxu0 0
      %382 = vmatprep.subr.bf16.mxu0 0
      %383 = vmatpush1.bf16.msra.mxu0 0
      %384 = vmatprep.mubr.bf16.mxu0 0
      %385 = vmatmul.mubr.bf16.gmra.mrb[0].mxu0 %v344
      %v386 = vpop.f32.mrb[0].mxu0
      %v387 = vadd.f32 0.0, %v386
      %v388 = vpop.f32.mrb[0].mxu0
      %v389 = vadd.f32 0.0, %v388
      %v390 = vpop.f32.mrb[0].mxu0
      %v391 = vpop.f32.mrb[0].mxu0
      %392 = vdwg.mxu0
      %v393 = vadd.f32 %v308, %v387
      %v394 = vadd.f32 %v310, %v389
      %v395 = vld [vmem:[%s165] sm:$0x3f]
      %s396 = scalar_lea.vmem %s0, 12
      %v397 = vld [vmem:[%s396] sm:$0xf]
      %v399 = vcombine.high %v395, %v395
      %v401 = vunpack.c.l.s4 1983009808
      %v402 = vunpack.c.0.s8 %v401
      %v403 = vlaneseq
      %v404 = vshrl.u32 %v403, 7
      %v405 = vsub.s32 %v402, %v404
      %v406 = vrot.slane %v395, %v405
      %v408 = vunpack.c.l.s4 1983009808
      %v409 = vunpack.c.0.s8 %v408
      %v410 = vlaneseq
      %v411 = vshrl.u32 %v410, 7
      %v412 = vsub.s32 %v409, %v411
      %v413 = vrot.slane %v399, %v412
      %v414 = vcombine.high %v406, %v406
      %415 = vrot.lane.b32.xlu0 %v406, 112
      %v416 = vpop.permute.xlu0 %415
      %417 = vrot.lane.b32.xlu0 %v414, 112
      %v418 = vpop.permute.xlu0 %417
      %419 = vrot.lane.b32.xlu0 %v413, 112
      %v420 = vpop.permute.xlu0 %419
      %vm421 = vcmask 916480
      %v422 = vsel %vm421, %v416, %v418
      %v423 = vsel %vm421, %v418, %v420
      %v425 = vsel %vm203, %v397, 0
      %v428 = vsel %vm207, %v422, 0
      %v431 = vsel %vm207, %v423, 0
      %433 = vmatprep.subr.bf16.mxu0 %v431
      %434 = vmatpush1.bf16.msra.mxu0 %v428
      %435 = vmatprep.subr.bf16.mxu0 0
      %436 = vmatpush1.bf16.msra.mxu0 0
      %437 = vmatprep.subr.bf16.mxu0 0
      %438 = vmatpush1.bf16.msra.mxu0 0
      %439 = vmatprep.subr.bf16.mxu0 0
      %440 = vmatpush1.bf16.msra.mxu0 0
      %441 = vmatprep.subr.bf16.mxu0 0
      %442 = vmatpush1.bf16.msra.mxu0 0
      %443 = vmatprep.subr.bf16.mxu0 0
      %444 = vmatpush1.bf16.msra.mxu0 0
      %445 = vmatprep.subr.bf16.mxu0 0
      %446 = vmatpush1.bf16.msra.mxu0 0
      %447 = vmatprep.subr.bf16.mxu0 0
      %448 = vmatpush1.bf16.msra.mxu0 0
      %449 = vmatprep.subr.bf16.mxu0 0
      %450 = vmatpush1.bf16.msra.mxu0 0
      %451 = vmatprep.subr.bf16.mxu0 0
      %452 = vmatpush1.bf16.msra.mxu0 0
      %453 = vmatprep.subr.bf16.mxu0 0
      %454 = vmatpush1.bf16.msra.mxu0 0
      %455 = vmatprep.subr.bf16.mxu0 0
      %456 = vmatpush1.bf16.msra.mxu0 0
      %457 = vmatprep.subr.bf16.mxu0 0
      %458 = vmatpush1.bf16.msra.mxu0 0
      %459 = vmatprep.subr.bf16.mxu0 0
      %460 = vmatpush1.bf16.msra.mxu0 0
      %461 = vmatprep.subr.bf16.mxu0 0
      %462 = vmatpush1.bf16.msra.mxu0 0
      %463 = vmatprep.subr.bf16.mxu0 0
      %464 = vmatpush1.bf16.msra.mxu0 0
      %465 = vmatprep.mubr.bf16.mxu0 0
      %466 = vmatmul.mubr.bf16.gmra.mrb[0].mxu0 %v425
      %v467 = vpop.f32.mrb[0].mxu0
      %v468 = vadd.f32 0.0, %v467
      %v469 = vpop.f32.mrb[0].mxu0
      %v470 = vadd.f32 0.0, %v469
      %v471 = vpop.f32.mrb[0].mxu0
      %v472 = vpop.f32.mrb[0].mxu0
      %473 = vdwg.mxu0
      %v474 = vadd.f32 %v393, %v468
      %v475 = vadd.f32 %v394, %v470
      %v476 = vld [vmem:[%s165] sm:$0x3f]
      %s477 = scalar_lea.vmem %s0, 16
      %v478 = vld [vmem:[%s477] sm:$0xf]
      %v480 = vcombine.high %v476, %v476
      %v482 = vunpack.c.l.s4 1983009808
      %v483 = vunpack.c.0.s8 %v482
      %v484 = vlaneseq
      %v485 = vshrl.u32 %v484, 7
      %v486 = vsub.s32 %v483, %v485
      %v487 = vrot.slane %v476, %v486
      %v489 = vunpack.c.l.s4 1983009808
      %v490 = vunpack.c.0.s8 %v489
      %v491 = vlaneseq
      %v492 = vshrl.u32 %v491, 7
      %v493 = vsub.s32 %v490, %v492
      %v494 = vrot.slane %v480, %v493
      %v495 = vcombine.high %v487, %v487
      %496 = vrot.lane.b32.xlu0 %v487, 111
      %v497 = vpop.permute.xlu0 %496
      %498 = vrot.lane.b32.xlu0 %v495, 111
      %v499 = vpop.permute.xlu0 %498
      %500 = vrot.lane.b32.xlu0 %v494, 111
      %v501 = vpop.permute.xlu0 %500
      %vm502 = vcmask 908288
      %v503 = vsel %vm502, %v497, %v499
      %v504 = vsel %vm502, %v499, %v501
      %v506 = vsel %vm203, %v478, 0
      %v509 = vsel %vm207, %v503, 0
      %v512 = vsel %vm207, %v504, 0
      %514 = vmatprep.subr.bf16.mxu0 %v512
      %515 = vmatpush1.bf16.msra.mxu0 %v509
      %516 = vmatprep.subr.bf16.mxu0 0
      %517 = vmatpush1.bf16.msra.mxu0 0
      %518 = vmatprep.subr.bf16.mxu0 0
      %519 = vmatpush1.bf16.msra.mxu0 0
      %520 = vmatprep.subr.bf16.mxu0 0
      %521 = vmatpush1.bf16.msra.mxu0 0
      %522 = vmatprep.subr.bf16.mxu0 0
      %523 = vmatpush1.bf16.msra.mxu0 0
      %524 = vmatprep.subr.bf16.mxu0 0
      %525 = vmatpush1.bf16.msra.mxu0 0
      %526 = vmatprep.subr.bf16.mxu0 0
      %527 = vmatpush1.bf16.msra.mxu0 0
      %528 = vmatprep.subr.bf16.mxu0 0
      %529 = vmatpush1.bf16.msra.mxu0 0
      %530 = vmatprep.subr.bf16.mxu0 0
      %531 = vmatpush1.bf16.msra.mxu0 0
      %532 = vmatprep.subr.bf16.mxu0 0
      %533 = vmatpush1.bf16.msra.mxu0 0
      %534 = vmatprep.subr.bf16.mxu0 0
      %535 = vmatpush1.bf16.msra.mxu0 0
      %536 = vmatprep.subr.bf16.mxu0 0
      %537 = vmatpush1.bf16.msra.mxu0 0
      %538 = vmatprep.subr.bf16.mxu0 0
      %539 = vmatpush1.bf16.msra.mxu0 0
      %540 = vmatprep.subr.bf16.mxu0 0
      %541 = vmatpush1.bf16.msra.mxu0 0
      %542 = vmatprep.subr.bf16.mxu0 0
      %543 = vmatpush1.bf16.msra.mxu0 0
      %544 = vmatprep.subr.bf16.mxu0 0
      %545 = vmatpush1.bf16.msra.mxu0 0
      %546 = vmatprep.mubr.bf16.mxu0 0
      %547 = vmatmul.mubr.bf16.gmra.mrb[0].mxu0 %v506
      %v548 = vpop.f32.mrb[0].mxu0
      %v549 = vadd.f32 0.0, %v548
      %v550 = vpop.f32.mrb[0].mxu0
      %v551 = vadd.f32 0.0, %v550
      %v552 = vpop.f32.mrb[0].mxu0
      %v553 = vpop.f32.mrb[0].mxu0
      %554 = vdwg.mxu0
      %v555 = vadd.f32 %v474, %v549
      %v556 = vadd.f32 %v475, %v551
      %v557 = vld [vmem:[%s165] sm:$0x3f]
      %s558 = scalar_lea.vmem %s0, 20
      %v559 = vld [vmem:[%s558] sm:$0xf]
      %v561 = vcombine.high %v557, %v557
      %v563 = vunpack.c.l.s4 1983009808
      %v564 = vunpack.c.0.s8 %v563
      %v565 = vlaneseq
      %v566 = vshrl.u32 %v565, 7
      %v567 = vsub.s32 %v564, %v566
      %v568 = vrot.slane %v557, %v567
      %v570 = vunpack.c.l.s4 1983009808
      %v571 = vunpack.c.0.s8 %v570
      %v572 = vlaneseq
      %v573 = vshrl.u32 %v572, 7
      %v574 = vsub.s32 %v571, %v573
      %v575 = vrot.slane %v561, %v574
      %v576 = vcombine.high %v568, %v568
      %577 = vrot.lane.b32.xlu0 %v568, 110
      %v578 = vpop.permute.xlu0 %577
      %579 = vrot.lane.b32.xlu0 %v576, 110
      %v580 = vpop.permute.xlu0 %579
      %581 = vrot.lane.b32.xlu0 %v575, 110
      %v582 = vpop.permute.xlu0 %581
      %vm583 = vcmask 900096
      %v584 = vsel %vm583, %v578, %v580
      %v585 = vsel %vm583, %v580, %v582
      %v587 = vsel %vm203, %v559, 0
      %v590 = vsel %vm207, %v584, 0
      %v593 = vsel %vm207, %v585, 0
      %595 = vmatprep.subr.bf16.mxu0 %v593
      %596 = vmatpush1.bf16.msra.mxu0 %v590
      %597 = vmatprep.subr.bf16.mxu0 0
      %598 = vmatpush1.bf16.msra.mxu0 0
      %599 = vmatprep.subr.bf16.mxu0 0
      %600 = vmatpush1.bf16.msra.mxu0 0
      %601 = vmatprep.subr.bf16.mxu0 0
      %602 = vmatpush1.bf16.msra.mxu0 0
      %603 = vmatprep.subr.bf16.mxu0 0
      %604 = vmatpush1.bf16.msra.mxu0 0
      %605 = vmatprep.subr.bf16.mxu0 0
      %606 = vmatpush1.bf16.msra.mxu0 0
      %607 = vmatprep.subr.bf16.mxu0 0
      %608 = vmatpush1.bf16.msra.mxu0 0
      %609 = vmatprep.subr.bf16.mxu0 0
      %610 = vmatpush1.bf16.msra.mxu0 0
      %611 = vmatprep.subr.bf16.mxu0 0
      %612 = vmatpush1.bf16.msra.mxu0 0
      %613 = vmatprep.subr.bf16.mxu0 0
      %614 = vmatpush1.bf16.msra.mxu0 0
      %615 = vmatprep.subr.bf16.mxu0 0
      %616 = vmatpush1.bf16.msra.mxu0 0
      %617 = vmatprep.subr.bf16.mxu0 0
      %618 = vmatpush1.bf16.msra.mxu0 0
      %619 = vmatprep.subr.bf16.mxu0 0
      %620 = vmatpush1.bf16.msra.mxu0 0
      %621 = vmatprep.subr.bf16.mxu0 0
      %622 = vmatpush1.bf16.msra.mxu0 0
      %623 = vmatprep.subr.bf16.mxu0 0
      %624 = vmatpush1.bf16.msra.mxu0 0
      %625 = vmatprep.subr.bf16.mxu0 0
      %626 = vmatpush1.bf16.msra.mxu0 0
      %627 = vmatprep.mubr.bf16.mxu0 0
      %628 = vmatmul.mubr.bf16.gmra.mrb[0].mxu0 %v587
      %v629 = vpop.f32.mrb[0].mxu0
      %v630 = vadd.f32 0.0, %v629
      %v631 = vpop.f32.mrb[0].mxu0
      %v632 = vadd.f32 0.0, %v631
      %v633 = vpop.f32.mrb[0].mxu0
      %v634 = vpop.f32.mrb[0].mxu0
      %635 = vdwg.mxu0
      %v636 = vadd.f32 %v555, %v630
      %v637 = vadd.f32 %v556, %v632
      %v638 = vld [vmem:[%s165] sm:$0x3f]
      %s639 = scalar_lea.vmem %s0, 24
      %v640 = vld [vmem:[%s639] sm:$0xf]
      %v642 = vcombine.high %v638, %v638
      %v644 = vunpack.c.l.s4 1983009808
      %v645 = vunpack.c.0.s8 %v644
      %v646 = vlaneseq
      %v647 = vshrl.u32 %v646, 7
      %v648 = vsub.s32 %v645, %v647
      %v649 = vrot.slane %v638, %v648
      %v651 = vunpack.c.l.s4 1983009808
      %v652 = vunpack.c.0.s8 %v651
      %v653 = vlaneseq
      %v654 = vshrl.u32 %v653, 7
      %v655 = vsub.s32 %v652, %v654
      %v656 = vrot.slane %v642, %v655
      %v657 = vcombine.high %v649, %v649
      %658 = vrot.lane.b32.xlu0 %v649, 96
      %v659 = vpop.permute.xlu0 %658
      %660 = vrot.lane.b32.xlu0 %v657, 96
      %v661 = vpop.permute.xlu0 %660
      %662 = vrot.lane.b32.xlu0 %v656, 96
      %v663 = vpop.permute.xlu0 %662
      %vm664 = vcmask 785408
      %v665 = vsel %vm664, %v659, %v661
      %v666 = vsel %vm664, %v661, %v663
      %v668 = vsel %vm203, %v640, 0
      %v671 = vsel %vm207, %v665, 0
      %v674 = vsel %vm207, %v666, 0
      %676 = vmatprep.subr.bf16.mxu0 %v674
      %677 = vmatpush1.bf16.msra.mxu0 %v671
      %678 = vmatprep.subr.bf16.mxu0 0
      %679 = vmatpush1.bf16.msra.mxu0 0
      %680 = vmatprep.subr.bf16.mxu0 0
      %681 = vmatpush1.bf16.msra.mxu0 0
      %682 = vmatprep.subr.bf16.mxu0 0
      %683 = vmatpush1.bf16.msra.mxu0 0
      %684 = vmatprep.subr.bf16.mxu0 0
      %685 = vmatpush1.bf16.msra.mxu0 0
      %686 = vmatprep.subr.bf16.mxu0 0
      %687 = vmatpush1.bf16.msra.mxu0 0
      %688 = vmatprep.subr.bf16.mxu0 0
      %689 = vmatpush1.bf16.msra.mxu0 0
      %690 = vmatprep.subr.bf16.mxu0 0
      %691 = vmatpush1.bf16.msra.mxu0 0
      %692 = vmatprep.subr.bf16.mxu0 0
      %693 = vmatpush1.bf16.msra.mxu0 0
      %694 = vmatprep.subr.bf16.mxu0 0
      %695 = vmatpush1.bf16.msra.mxu0 0
      %696 = vmatprep.subr.bf16.mxu0 0
      %697 = vmatpush1.bf16.msra.mxu0 0
      %698 = vmatprep.subr.bf16.mxu0 0
      %699 = vmatpush1.bf16.msra.mxu0 0
      %700 = vmatprep.subr.bf16.mxu0 0
      %701 = vmatpush1.bf16.msra.mxu0 0
      %702 = vmatprep.subr.bf16.mxu0 0
      %703 = vmatpush1.bf16.msra.mxu0 0
      %704 = vmatprep.subr.bf16.mxu0 0
      %705 = vmatpush1.bf16.msra.mxu0 0
      %706 = vmatprep.subr.bf16.mxu0 0
      %707 = vmatpush1.bf16.msra.mxu0 0
      %708 = vmatprep.mubr.bf16.mxu0 0
      %709 = vmatmul.mubr.bf16.gmra.mrb[0].mxu0 %v668
      %v710 = vpop.f32.mrb[0].mxu0
      %v711 = vadd.f32 0.0, %v710
      %v712 = vpop.f32.mrb[0].mxu0
      %v713 = vadd.f32 0.0, %v712
      %v714 = vpop.f32.mrb[0].mxu0
      %v715 = vpop.f32.mrb[0].mxu0
      %716 = vdwg.mxu0
      %v717 = vadd.f32 %v636, %v711
      %v718 = vadd.f32 %v637, %v713
      %v719 = vld [vmem:[%s165] sm:$0x3f]
      %s720 = scalar_lea.vmem %s0, 28
      %v721 = vld [vmem:[%s720] sm:$0xf]
      %v723 = vcombine.high %v719, %v719
      %v725 = vunpack.c.l.s4 1983009808
      %v726 = vunpack.c.0.s8 %v725
      %v727 = vlaneseq
      %v728 = vshrl.u32 %v727, 7
      %v729 = vsub.s32 %v726, %v728
      %v730 = vrot.slane %v719, %v729
      %v732 = vunpack.c.l.s4 1983009808
      %v733 = vunpack.c.0.s8 %v732
      %v734 = vlaneseq
      %v735 = vshrl.u32 %v734, 7
      %v736 = vsub.s32 %v733, %v735
      %v737 = vrot.slane %v723, %v736
      %v738 = vcombine.high %v730, %v730
      %739 = vrot.lane.b32.xlu0 %v730, 95
      %v740 = vpop.permute.xlu0 %739
      %741 = vrot.lane.b32.xlu0 %v738, 95
      %v742 = vpop.permute.xlu0 %741
      %743 = vrot.lane.b32.xlu0 %v737, 95
      %v744 = vpop.permute.xlu0 %743
      %vm745 = vcmask 777216
      %v746 = vsel %vm745, %v740, %v742
      %v747 = vsel %vm745, %v742, %v744
      %v749 = vsel %vm203, %v721, 0
      %v752 = vsel %vm207, %v746, 0
      %v755 = vsel %vm207, %v747, 0
      %757 = vmatprep.subr.bf16.mxu0 %v755
      %758 = vmatpush1.bf16.msra.mxu0 %v752
      %759 = vmatprep.subr.bf16.mxu0 0
      %760 = vmatpush1.bf16.msra.mxu0 0
      %761 = vmatprep.subr.bf16.mxu0 0
      %762 = vmatpush1.bf16.msra.mxu0 0
      %763 = vmatprep.subr.bf16.mxu0 0
      %764 = vmatpush1.bf16.msra.mxu0 0
      %765 = vmatprep.subr.bf16.mxu0 0
      %766 = vmatpush1.bf16.msra.mxu0 0
      %767 = vmatprep.subr.bf16.mxu0 0
      %768 = vmatpush1.bf16.msra.mxu0 0
      %769 = vmatprep.subr.bf16.mxu0 0
      %770 = vmatpush1.bf16.msra.mxu0 0
      %771 = vmatprep.subr.bf16.mxu0 0
      %772 = vmatpush1.bf16.msra.mxu0 0
      %773 = vmatprep.subr.bf16.mxu0 0
      %774 = vmatpush1.bf16.msra.mxu0 0
      %775 = vmatprep.subr.bf16.mxu0 0
      %776 = vmatpush1.bf16.msra.mxu0 0
      %777 = vmatprep.subr.bf16.mxu0 0
      %778 = vmatpush1.bf16.msra.mxu0 0
      %779 = vmatprep.subr.bf16.mxu0 0
      %780 = vmatpush1.bf16.msra.mxu0 0
      %781 = vmatprep.subr.bf16.mxu0 0
      %782 = vmatpush1.bf16.msra.mxu0 0
      %783 = vmatprep.subr.bf16.mxu0 0
      %784 = vmatpush1.bf16.msra.mxu0 0
      %785 = vmatprep.subr.bf16.mxu0 0
      %786 = vmatpush1.bf16.msra.mxu0 0
      %787 = vmatprep.subr.bf16.mxu0 0
      %788 = vmatpush1.bf16.msra.mxu0 0
      %789 = vmatprep.mubr.bf16.mxu0 0
      %790 = vmatmul.mubr.bf16.gmra.mrb[0].mxu0 %v749
      %v791 = vpop.f32.mrb[0].mxu0
      %v792 = vadd.f32 0.0, %v791
      %v793 = vpop.f32.mrb[0].mxu0
      %v794 = vadd.f32 0.0, %v793
      %v795 = vpop.f32.mrb[0].mxu0
      %v796 = vpop.f32.mrb[0].mxu0
      %797 = vdwg.mxu0
      %v798 = vadd.f32 %v717, %v792
      %v799 = vadd.f32 %v718, %v794
      %v800 = vld [vmem:[%s165] sm:$0x3f]
      %s801 = scalar_lea.vmem %s0, 32
      %v802 = vld [vmem:[%s801] sm:$0xf]
      %v804 = vcombine.high %v800, %v800
      %v806 = vunpack.c.l.s4 1983009808
      %v807 = vunpack.c.0.s8 %v806
      %v808 = vlaneseq
      %v809 = vshrl.u32 %v808, 7
      %v810 = vsub.s32 %v807, %v809
      %v811 = vrot.slane %v800, %v810
      %v813 = vunpack.c.l.s4 1983009808
      %v814 = vunpack.c.0.s8 %v813
      %v815 = vlaneseq
      %v816 = vshrl.u32 %v815, 7
      %v817 = vsub.s32 %v814, %v816
      %v818 = vrot.slane %v804, %v817
      %v819 = vcombine.high %v811, %v811
      %820 = vrot.lane.b32.xlu0 %v811, 94
      %v821 = vpop.permute.xlu0 %820
      %822 = vrot.lane.b32.xlu0 %v819, 94
      %v823 = vpop.permute.xlu0 %822
      %824 = vrot.lane.b32.xlu0 %v818, 94
      %v825 = vpop.permute.xlu0 %824
      %vm826 = vcmask 769024
      %v827 = vsel %vm826, %v821, %v823
      %v828 = vsel %vm826, %v823, %v825
      %v830 = vsel %vm203, %v802, 0
      %v833 = vsel %vm207, %v827, 0
      %v836 = vsel %vm207, %v828, 0
      %838 = vmatprep.subr.bf16.mxu0 %v836
      %839 = vmatpush1.bf16.msra.mxu0 %v833
      %840 = vmatprep.subr.bf16.mxu0 0
      %841 = vmatpush1.bf16.msra.mxu0 0
      %842 = vmatprep.subr.bf16.mxu0 0
      %843 = vmatpush1.bf16.msra.mxu0 0
      %844 = vmatprep.subr.bf16.mxu0 0
      %845 = vmatpush1.bf16.msra.mxu0 0
      %846 = vmatprep.subr.bf16.mxu0 0
      %847 = vmatpush1.bf16.msra.mxu0 0
      %848 = vmatprep.subr.bf16.mxu0 0
      %849 = vmatpush1.bf16.msra.mxu0 0
      %850 = vmatprep.subr.bf16.mxu0 0
      %851 = vmatpush1.bf16.msra.mxu0 0
      %852 = vmatprep.subr.bf16.mxu0 0
      %853 = vmatpush1.bf16.msra.mxu0 0
      %854 = vmatprep.subr.bf16.mxu0 0
      %855 = vmatpush1.bf16.msra.mxu0 0
      %856 = vmatprep.subr.bf16.mxu0 0
      %857 = vmatpush1.bf16.msra.mxu0 0
      %858 = vmatprep.subr.bf16.mxu0 0
      %859 = vmatpush1.bf16.msra.mxu0 0
      %860 = vmatprep.subr.bf16.mxu0 0
      %861 = vmatpush1.bf16.msra.mxu0 0
      %862 = vmatprep.subr.bf16.mxu0 0
      %863 = vmatpush1.bf16.msra.mxu0 0
      %864 = vmatprep.subr.bf16.mxu0 0
      %865 = vmatpush1.bf16.msra.mxu0 0
      %866 = vmatprep.subr.bf16.mxu0 0
      %867 = vmatpush1.bf16.msra.mxu0 0
      %868 = vmatprep.subr.bf16.mxu0 0
      %869 = vmatpush1.bf16.msra.mxu0 0
      %870 = vmatprep.mubr.bf16.mxu0 0
      %871 = vmatmul.mubr.bf16.gmra.mrb[0].mxu0 %v830
      %v872 = vpop.f32.mrb[0].mxu0
      %v873 = vadd.f32 0.0, %v872
      %v874 = vpop.f32.mrb[0].mxu0
      %v875 = vadd.f32 0.0, %v874
      %v876 = vpop.f32.mrb[0].mxu0
      %v877 = vpop.f32.mrb[0].mxu0
      %878 = vdwg.mxu0
      %v879 = vadd.f32 %v798, %v873
      %v880 = vadd.f32 %v799, %v875
      %v881 = vld [vmem:[%s1] sm:$0xff]
      %883 = vset.pattern.permute.xlu0 0
      %884 = vperm.xlu0 %883, %v881
      %v885 = vpop.permute.xlu0 %884
      %v887 = vadd.f32 %v879, %v885
      %v888 = vadd.f32 %v880, %v885
      %889 = vst [vmem:[%s170] sm:$0xff] %v887
      %890 = vst [vmem:[%s170 + $0x8] sm:$0xff] %v888
      %p891 = scmp.lt.s32.totalorder %s14, 1
      %s892 = scalar_select %p891, %s14, 1
      %s893 = smul.addr %s892, 2
      %s894 = smul.addr %s893, 8
      %s895 = scalar_lea.vmem %s3, %s894
      // Predicated region
      $region33: #{new_mod1_forward.1} parent=31 // pred_check
        %p896 = pneg %p100
      $region34: #{new_mod1_forward.1} parent=31 // pred_check_branch
        %898 = sbr.rel (%p896) target = $region36
      $region35: #{new_mod1_forward.1} parent=31 // pred_region
        _
      $region36: #{new_mod1_forward.1} parent=31 // pred_fallthru
        _
    $region32: #{new_mod1_forward.1} parent=5 // pred_fallthru
      _
    %p899 = scmp.le.s32.totalorder 2, %s9
    // Predicated region
    $region37: #{new_mod1_forward.1} parent=5 // pred_check
      %p900 = pneg %p899
    $region38: #{new_mod1_forward.1} parent=5 // pred_check_branch
      %902 = sbr.rel (%p900) target = $region40
    $region39: #{new_mod1_forward.1} parent=5 // pred_region
      %s903 = ssub.s32 %s9, 2
      // Predicated region
      $region41: #{new_mod1_forward.1} parent=39 // pred_check
        %p904 = pneg %p106
      $region42: #{new_mod1_forward.1} parent=39 // pred_check_branch
        %906 = sbr.rel (%p904) target = $region44
      $region43: #{new_mod1_forward.1} parent=39 // pred_region
        %p907 = scmp.lt.s32.totalorder %s15, 1
        %s908 = scalar_select %p907, %s15, 1
        %s909 = smul.addr %s908, 2
        %s910 = smul.addr %s909, 8
        %s911 = scalar_lea.vmem %s3, %s910
      $region44: #{new_mod1_forward.1} parent=39 // pred_fallthru
        _
    $region40: #{new_mod1_forward.1} parent=5 // pred_fallthru
      _
  $region6: #{new_mod1_forward.1} parent=0 // loop_footer
    %s13 = sadd.s32 1, %s9
  $region7: #{new_mod1_forward.1} parent=0 // loop_footer_branch
    %8 = sbr.rel target = $region3
  $region8: #{new_mod1_forward.1} parent=0 // loop_exit
    _

</llo_original>
